<compile_context>
chip_gen: v5e
topology: v5e:2x2
jax: 0.10.0
libtpu: 0.0.40
codegen_flags: <defaults>
</compile_context>

<pallas_src>
import jax
import jax.numpy as jnp
from jax import lax
from jax.experimental import pallas as pl
from jax.experimental.pallas import tpu as pltpu

_LANE = 128
_BN_EPS = 1e-5
# Rows per M-tile.  >=1024 reaches ~85%+ of the HBM roofline on all generations and
# still fits comfortably in v7x's 64 MiB VMEM at these K / lane widths.
_TARGET_TM = 1024


def _round_up(x, m):
    return ((x + m - 1) // m) * m


def _pick_tile_m(m, target):
    # Largest sublane-aligned candidate that exactly divides M (no partial tiles, so the
    # per-tile BatchNorm partial sums never include out-of-bounds rows).
    for t in (target, 1024, 512, 256, 128, 64, 32, 16, 8):
        if t <= m and m % t == 0:
            return t
    return m


def _vmem_limit_bytes():
    # Half of physical VMEM: 64 MiB on v5e/v6e (128 MiB parts), 32 MiB on v7x (64 MiB).
    try:
        cap = int(pltpu.get_tpu_info().vmem_capacity_bytes)
    except Exception:
        cap = 64 * 1024 * 1024  # conservative fallback -> 32 MiB limit, safe everywhere
    return int(min(cap // 2, 64 * 1024 * 1024))


# ----------------------------------------------------------------------------
# Pallas kernels
# ----------------------------------------------------------------------------
def _mm_stats_kernel(p_ref, w_ref, stats_ref):
    # p_ref: [tM, K] bf16 (grouped) im2col rows; w_ref: [K, L] bf16 block-diag weight.
    # Stats-only pass: training-mode BatchNorm needs a full sweep before normalizing;
    # only the (2, L) partials (row0 = sum, row1 = sum of squares) go to HBM, never the
    # [tM, L] pre-activations.
    a = jnp.dot(p_ref[...], w_ref[...], preferred_element_type=jnp.float32)
    s1 = jnp.sum(a, axis=0, keepdims=True)
    s2 = jnp.sum(a * a, axis=0, keepdims=True)
    row = lax.broadcasted_iota(jnp.int32, (2, a.shape[1]), 0)
    stats_ref[...] = jnp.where(row == 0, s1, s2)


def _mm_bn_relu_kernel(p_ref, w_ref, scale_ref, shift_ref, y_ref):
    # Fused pass 2 (recompute flavour): matmul recomputed on the MXU, then
    # y = relu(a * scale + shift) with scale/shift folding mean/var/gamma/beta (f32),
    # stored lane-dense as bf16.  No f32 accumulator ever touches HBM.
    a = jnp.dot(p_ref[...], w_ref[...], preferred_element_type=jnp.float32)
    y_ref[...] = jnp.maximum(a * scale_ref[...] + shift_ref[...], 0.0).astype(y_ref.dtype)


def _mm_acc_stats_kernel(p_ref, w_ref, acc_ref, stats_ref):
    # Pass 1 (staged flavour, used when K is fat): matmul once, stage pre-activations as
    # bf16 (half of the old f32 round-trip) plus per-tile BN partials.
    a = jnp.dot(p_ref[...], w_ref[...], preferred_element_type=jnp.float32)
    acc_ref[...] = a.astype(acc_ref.dtype)
    s1 = jnp.sum(a, axis=0, keepdims=True)
    s2 = jnp.sum(a * a, axis=0, keepdims=True)
    row = lax.broadcasted_iota(jnp.int32, (2, a.shape[1]), 0)
    stats_ref[...] = jnp.where(row == 0, s1, s2)


def _bn_relu_kernel(acc_ref, scale_ref, shift_ref, y_ref):
    # Pass 2 (staged flavour): normalize + ReLU on the bf16 staging buffer, math in f32.
    a = acc_ref[...].astype(jnp.float32)
    y_ref[...] = jnp.maximum(a * scale_ref[...] + shift_ref[...], 0.0).astype(y_ref.dtype)


def _conv4_heads_reparam_kernel(h_ref, w4_ref, g_ref, b_ref, wh_ref, bh_ref, eps_ref,
                                mu_ref, lv_ref, z_ref):
    # conv4 (1x1 spatial output) as a linear layer + BatchNorm(train) + ReLU, fused with
    # the concatenated mu/logvar heads and the reparameterization trick.
    h4 = jnp.dot(h_ref[...], w4_ref[...], preferred_element_type=jnp.float32)  # [N, Hp]
    mean = jnp.mean(h4, axis=0, keepdims=True)
    var = jnp.maximum(jnp.mean(h4 * h4, axis=0, keepdims=True) - mean * mean, 0.0)
    hn = (h4 - mean) * lax.rsqrt(var + _BN_EPS) * g_ref[...] + b_ref[...]
    hn = jnp.maximum(hn, 0.0)
    heads = jnp.dot(hn.astype(wh_ref.dtype), wh_ref[...],
                    preferred_element_type=jnp.float32) + bh_ref[...]           # [N, 2*Zp]
    zp = mu_ref.shape[1]
    mu = heads[:, :zp]
    lv = heads[:, zp:]
    mu_ref[...] = mu
    lv_ref[...] = lv
    z_ref[...] = eps_ref[...] * jnp.exp(lv * 0.5) + mu


# ----------------------------------------------------------------------------
# Layer wrappers
# ----------------------------------------------------------------------------
def conv_bn_relu(x_nhwc, w, gamma, beta, *, stride, pad, target_tm=_TARGET_TM):
    """Conv2d + BatchNorm2d(training statistics) + ReLU.
    x: [N,H,W,Cin] (bf16), w: [Cout,Cin,k,k] (f32).  Returns [N,Ho,Wo,Cout] bf16.
    The conv bias is omitted: a per-channel constant cancels exactly under training-mode
    BatchNorm."""
    n = x_nhwc.shape[0]
    cout, _, k, _ = w.shape

    # im2col in NHWC; feature order = (cin, kh, kw), matching w.reshape(cout, -1)
    # (validated against lax.conv_general_dilated in __main__).
    # TODO(synk): patches are still materialized by XLA; in-kernel patch assembly from
    # overlapping NHWC windows (manual DMA) is the next HBM-traffic cut.
    patches = lax.conv_general_dilated_patches(
        x_nhwc, (k, k), (stride, stride), [(pad, pad), (pad, pad)],
        dimension_numbers=("NHWC", "HWIO", "NHWC"))
    _, ho, wo, kk = patches.shape
    m = n * ho * wo
    patches = patches.reshape(m, kk).astype(jnp.bfloat16)

    # Lane-dense stores WITHOUT channel padding where possible: group g consecutive
    # output rows so the store lane dim is g*cout (= 128).  The RHS becomes the block
    # diagonal kron(I_g, W): identical MXU flops to 128-padding, but the activation
    # streams carry no padded channels and no XLA slice copy is needed afterwards.
    if cout % _LANE == 0:
        g, cpg = 1, cout                          # already lane-dense
    elif _LANE % cout == 0 and m % (_LANE // cout) == 0:
        g, cpg = _LANE // cout, cout              # row-grouped, zero padding
    else:
        g, cpg = 1, _round_up(cout, _LANE)        # fallback: pad channels to 128
    lane = g * cpg
    mg = m // g
    kg = g * kk

    wmat = jnp.pad(w.reshape(cout, kk).T.astype(jnp.float32), ((0, 0), (0, cpg - cout)))
    wgrp = jnp.kron(jnp.eye(g, dtype=jnp.float32), wmat).astype(jnp.bfloat16)  # [kg,lane]
    pgrp = patches.reshape(mg, kg)                # free reshape (row-major contiguous)

    tm = _pick_tile_m(mg, target_tm)
    nm = mg // tm
    cparams = pltpu.CompilerParams(dimension_semantics=("parallel",),
                                   vmem_limit_bytes=_vmem_limit_bytes())

    # HBM bytes/row model: recompute = 4*kk + 2*cpg, staged bf16 acc = 2*kk + 6*cpg.
    recompute = kk < 2 * cpg

    in_mm = [pl.BlockSpec((tm, kg), lambda i: (i, 0)),
             pl.BlockSpec((kg, lane), lambda i: (0, 0))]
    stats_spec = pl.BlockSpec((2, lane), lambda i: (0, i))
    tile_spec = pl.BlockSpec((tm, lane), lambda i: (i, 0))
    bcast = pl.BlockSpec((1, lane), lambda i: (0, 0))

    acc = None
    if recompute:
        stats = pl.pallas_call(
            _mm_stats_kernel,
            out_shape=jax.ShapeDtypeStruct((2, nm * lane), jnp.float32),
            grid=(nm,),
            in_specs=in_mm,
            out_specs=stats_spec,
            compiler_params=cparams,
            cost_estimate=pl.CostEstimate(
                flops=2 * mg * kg * lane, transcendentals=0,
                bytes_accessed=mg * kg * 2 + kg * lane * 2 + 2 * nm * lane * 4),
        )(pgrp, wgrp)
    else:
        acc, stats = pl.pallas_call(
            _mm_acc_stats_kernel,
            out_shape=(jax.ShapeDtypeStruct((mg, lane), jnp.bfloat16),
                       jax.ShapeDtypeStruct((2, nm * lane), jnp.float32)),
            grid=(nm,),
            in_specs=in_mm,
            out_specs=[tile_spec, stats_spec],
            compiler_params=cparams,
            cost_estimate=pl.CostEstimate(
                flops=2 * mg * kg * lane, transcendentals=0,
                bytes_accessed=(mg * kg * 2 + kg * lane * 2 + mg * lane * 2
                                + 2 * nm * lane * 4)),
        )(pgrp, wgrp)

    # Global (biased, training-mode) BatchNorm statistics; tiny per-channel math in JAX.
    # NOTE: E[x^2]-E[x]^2 in f32 is fine while |mean| ~ std; switch to a shifted /
    # Welford accumulation if activations ever drift to large means.
    tot = stats.reshape(2, nm, g, cpg).sum(axis=(1, 2))          # [2, cpg]
    mean = tot[0] / m
    var = jnp.maximum(tot[1] / m - mean * mean, 0.0)
    gamma_p = jnp.pad(gamma.astype(jnp.float32), (0, cpg - cout))
    beta_p = jnp.pad(beta.astype(jnp.float32), (0, cpg - cout))
    scale_c = gamma_p * lax.rsqrt(var + _BN_EPS)
    shift_c = beta_p - mean * scale_c
    scale = jnp.tile(scale_c, g).reshape(1, lane)
    shift = jnp.tile(shift_c, g).reshape(1, lane)

    if recompute:
        y = pl.pallas_call(
            _mm_bn_relu_kernel,
            out_shape=jax.ShapeDtypeStruct((mg, lane), jnp.bfloat16),
            grid=(nm,),
            in_specs=in_mm + [bcast, bcast],
            out_specs=tile_spec,
            compiler_params=cparams,
            cost_estimate=pl.CostEstimate(
                flops=2 * mg * kg * lane + 3 * mg * lane, transcendentals=0,
                bytes_accessed=mg * kg * 2 + kg * lane * 2 + mg * lane * 2 + 2 * lane * 4),
        )(pgrp, wgrp, scale, shift)
    else:
        y = pl.pallas_call(
            _bn_relu_kernel,
            out_shape=jax.ShapeDtypeStruct((mg, lane), jnp.bfloat16),
            grid=(nm,),
            in_specs=[tile_spec, bcast, bcast],
            out_specs=tile_spec,
            compiler_params=cparams,
            cost_estimate=pl.CostEstimate(
                flops=3 * mg * lane, transcendentals=0,
                bytes_accessed=mg * lane * 4 + 2 * lane * 4),
        )(acc, scale, shift)

    y = y.reshape(mg, g, cpg)
    if cpg != cout:
        y = y[:, :, :cout]           # only on the padded fallback path
    return y.reshape(n, ho, wo, cout)


def conv4_heads_reparam(h3_nhwc, w4, gamma4, beta4, w_mu, b_mu, w_lv, b_lv, eps):
    """Fused conv4(+BN+ReLU) + linear_mu/linear_log_var + reparameterization.
    conv4 (4x4 kernel on a 4x4 map, stride 1, no pad) has a 1x1 spatial output, i.e. it
    is a pure linear layer.  BatchNorm-over-batch needs all N rows resident and
    [N, hidden] is tiny -> single block.
    TODO(synk): on v7x this grid=(1,) kernel uses one TensorCore; split the first matmul
    over an N grid axis (with the same partial-stats trick) if the batch becomes large."""
    n, hh, ww, c3 = h3_nhwc.shape
    hidden = w4.shape[0]
    z_dim = w_mu.shape[0]
    k4 = hh * ww * c3
    hp = _round_up(hidden, _LANE)
    zp = _round_up(z_dim, _LANE)

    # conv4 output is 1x1 spatial -> linear layer.  Reorder the weight to (kh, kw, cin)
    # flattening so it matches the NHWC activation layout.
    h3 = h3_nhwc.reshape(n, k4).astype(jnp.bfloat16)
    w4m = w4.transpose(0, 2, 3, 1).reshape(hidden, k4).T.astype(jnp.bfloat16)
    w4m = jnp.pad(w4m, ((0, 0), (0, hp - hidden)))
    g4 = jnp.pad(gamma4, (0, hp - hidden)).reshape(1, hp).astype(jnp.float32)
    b4 = jnp.pad(beta4, (0, hp - hidden)).reshape(1, hp).astype(jnp.float32)

    # Fused mu/logvar head: one [hp, 2*zp] matrix (mu in cols [0:zp), logvar in [zp:2zp)).
    wh = jnp.zeros((hp, 2 * zp), jnp.float32)
    wh = wh.at[:hidden, :z_dim].set(w_mu.T)
    wh = wh.at[:hidden, zp:zp + z_dim].set(w_lv.T)
    wh = wh.astype(jnp.bfloat16)
    bh = jnp.zeros((1, 2 * zp), jnp.float32)
    bh = bh.at[0, :z_dim].set(b_mu)
    bh = bh.at[0, zp:zp + z_dim].set(b_lv)
    eps_p = jnp.pad(eps.astype(jnp.float32), ((0, 0), (0, zp - z_dim)))

    mu, lv, z = pl.pallas_call(
        _conv4_heads_reparam_kernel,
        out_shape=(jax.ShapeDtypeStruct((n, zp), jnp.float32),
                   jax.ShapeDtypeStruct((n, zp), jnp.float32),
                   jax.ShapeDtypeStruct((n, zp), jnp.float32)),
        grid=(1,),
        in_specs=[
            pl.BlockSpec((n, k4), lambda i: (0, 0)),
            pl.BlockSpec((k4, hp), lambda i: (0, 0)),
            pl.BlockSpec((1, hp), lambda i: (0, 0)),
            pl.BlockSpec((1, hp), lambda i: (0, 0)),
            pl.BlockSpec((hp, 2 * zp), lambda i: (0, 0)),
            pl.BlockSpec((1, 2 * zp), lambda i: (0, 0)),
            pl.BlockSpec((n, zp), lambda i: (0, 0)),
        ],
        out_specs=[pl.BlockSpec((n, zp), lambda i: (0, 0))] * 3,
        compiler_params=pltpu.CompilerParams(vmem_limit_bytes=_vmem_limit_bytes()),
        cost_estimate=pl.CostEstimate(
            flops=2 * n * k4 * hp + 2 * n * hp * 2 * zp,
            transcendentals=n * zp,
            bytes_accessed=n * k4 * 2 + k4 * hp * 2 + hp * 2 * zp * 2 + 4 * n * zp * 4),
    )(h3, w4m, g4, b4, wh, bh, eps_p)
    return mu[:, :z_dim], lv[:, :z_dim], z[:, :z_dim]


# ----------------------------------------------------------------------------
# Parameters + forward
# ----------------------------------------------------------------------------
def init_params(key, num_channels, num_filters, hidden_size, z_dim):
    ks = jax.random.split(key, 6)
    f = num_filters

    def conv_p(k, cout, cin, ksz):
        w = jax.random.normal(k, (cout, cin, ksz, ksz), jnp.float32) * 0.05
        gamma = jnp.ones((cout,), jnp.float32)
        beta = jnp.zeros((cout,), jnp.float32)
        return (w, gamma, beta)   # conv bias omitted: it cancels exactly under BatchNorm

    return {
        "conv1": conv_p(ks[0], f, num_channels, 4),
        "conv2": conv_p(ks[1], 2 * f, f, 4),
        "conv3": conv_p(ks[2], 4 * f, 2 * f, 4),
        "conv4": conv_p(ks[3], hidden_size, 4 * f, 4),
        "w_mu": jax.random.normal(ks[4], (z_dim, hidden_size), jnp.float32) * 0.05,
        "b_mu": jnp.zeros((z_dim,), jnp.float32),
        "w_lv": jax.random.normal(ks[5], (z_dim, hidden_size), jnp.float32) * 0.05,
        "b_lv": jnp.zeros((z_dim,), jnp.float32),
    }


def conv_vae_forward(params, x_nchw, eps):
    # Single NCHW->NHWC layout change at the module boundary; everything downstream is
    # NHWC / bf16 activations (matmul operands bf16, BN statistics / normalization f32).
    x = jnp.transpose(x_nchw, (0, 2, 3, 1)).astype(jnp.bfloat16)
    h = conv_bn_relu(x, *params["conv1"], stride=2, pad=1)   # [N,16,16,  F]
    h = conv_bn_relu(h, *params["conv2"], stride=2, pad=1)   # [N, 8, 8, 2F]
    h = conv_bn_relu(h, *params["conv3"], stride=2, pad=1)   # [N, 4, 4, 4F]
    mu, logvar, z = conv4_heads_reparam(
        h, *params["conv4"],
        params["w_mu"], params["b_mu"], params["w_lv"], params["b_lv"], eps)
    # TODO(synk): Generator_dcgan0 decoder is not defined in the reference; returning z.
    recon = z
    return recon, mu, logvar


# ----------------------------------------------------------------------------
# Pure-JAX references (correctness checks against lax.conv_general_dilated)
# ----------------------------------------------------------------------------
def _layer_reference(x_nhwc, w, gamma, beta, *, stride, pad):
    y = lax.conv_general_dilated(
        x_nhwc.astype(jnp.bfloat16),
        jnp.transpose(w, (2, 3, 1, 0)).astype(jnp.bfloat16),
        (stride, stride), [(pad, pad), (pad, pad)],
        dimension_numbers=("NHWC", "HWIO", "NHWC"),
        preferred_element_type=jnp.float32)
    mean = jnp.mean(y, axis=(0, 1, 2))
    var = jnp.mean(jnp.square(y - mean), axis=(0, 1, 2))
    y = (y - mean) * lax.rsqrt(var + _BN_EPS) * gamma + beta
    return jnp.maximum(y, 0.0)


def _reference_forward(params, x_nchw, eps):
    h = jnp.transpose(x_nchw, (0, 2, 3, 1))
    for name, stride, pad in (("conv1", 2, 1), ("conv2", 2, 1),
                              ("conv3", 2, 1), ("conv4", 1, 0)):
        h = _layer_reference(h, *params[name], stride=stride, pad=pad)
    nb = h.shape[0]
    h = h.reshape(nb, -1).astype(jnp.bfloat16)        # conv4 output is 1x1 spatial
    mu = jnp.dot(h, params["w_mu"].T.astype(jnp.bfloat16),
                 preferred_element_type=jnp.float32) + params["b_mu"]
    logvar = jnp.dot(h, params["w_lv"].T.astype(jnp.bfloat16),
                     preferred_element_type=jnp.float32) + params["b_lv"]
    z = eps * jnp.exp(0.5 * logvar) + mu
    return mu, logvar, z


def _check_conv_layer(key, x_shape_nhwc, cout, *, stride, pad, tol=0.03):
    k1, k2, k3, k4 = jax.random.split(key, 4)
    cin = x_shape_nhwc[-1]
    x = jax.random.normal(k1, x_shape_nhwc, jnp.float32)
    w = jax.random.normal(k2, (cout, cin, 4, 4), jnp.float32) * 0.05
    gamma = 1.0 + 0.1 * jax.random.normal(k3, (cout,), jnp.float32)
    beta = 0.1 * jax.random.normal(k4, (cout,), jnp.float32)
    got = conv_bn_relu(x.astype(jnp.bfloat16), w, gamma, beta,
                       stride=stride, pad=pad).astype(jnp.float32)
    ref = _layer_reference(x, w, gamma, beta, stride=stride, pad=pad)
    err = float(jnp.max(jnp.abs(got - ref) / (1.0 + jnp.abs(ref))))
    assert err < tol, f"conv_bn_relu mismatch (cout={cout}): err={err}"


# ----------------------------------------------------------------------------
if __name__ == "__main__":
    # Small but architecture-consistent shapes (spatial must be 32 for the 4-conv stack).
    n, c, hgt, wdt = 2, 3, 32, 32
    num_filters = 8
    hidden_size = 32
    z_dim = 8

    key = jax.random.PRNGKey(0)
    k_x, k_eps, k_p, k_c1, k_c2 = jax.random.split(key, 5)

    # Per-layer checks vs lax.conv_general_dilated (also validates the assumed
    # (cin, kh, kw) feature order of conv_general_dilated_patches):
    #  - padded-lane fallback + fused-recompute path (Cout=24 does not divide 128),
    #  - row-grouped lane-dense + fused-recompute path (Cout=32 -> g=4).
    _check_conv_layer(k_c1, (2, 8, 8, 3), 24, stride=2, pad=1)
    _check_conv_layer(k_c2, (2, 8, 8, 1), 32, stride=2, pad=1)

    x = jax.random.normal(k_x, (n, c, hgt, wdt), jnp.float32)
    eps = jax.random.normal(k_eps, (n, z_dim), jnp.float32)
    params = init_params(k_p, c, num_filters, hidden_size, z_dim)

    fwd = jax.jit(conv_vae_forward)
    recon, mu, logvar = fwd(params, x, eps)
    jax.block_until_ready((recon, mu, logvar))

    assert mu.shape == (n, z_dim) and logvar.shape == (n, z_dim)
    assert recon.shape == (n, z_dim)
    assert bool(jnp.all(jnp.isfinite(mu))) and bool(jnp.all(jnp.isfinite(logvar)))
    assert bool(jnp.all(jnp.isfinite(recon)))

    # Full-forward numeric check (exercises the row-grouped + staged-bf16-acc conv path
    # and the fused head kernel).
    mu_r, lv_r, z_r = _reference_forward(params, x, eps)
    for got, ref in ((mu, mu_r), (logvar, lv_r), (recon, z_r)):
        err = float(jnp.max(jnp.abs(got - ref) / (1.0 + jnp.abs(ref))))
        assert err < 0.05, f"forward mismatch vs pure-JAX reference: {err}"

    print("KERNEL_OK")
</pallas_src>

<mosaic_0001>
module attributes {stable_mosaic.version = 11 : i64} {
  func.func @_mm_stats_kernel(%arg0: i32, %arg1: memref<32x48xbf16, #tpu.memory_space<vmem>>, %arg2: memref<48x128xbf16, #tpu.memory_space<vmem>>, %arg3: memref<2x128xf32, #tpu.memory_space<vmem>>) attributes {dimension_semantics = [#tpu.dimension_semantics<parallel>], iteration_bounds = array<i64: 1>, scalar_prefetch = 0 : i64, scratch_operands = 0 : i64, tpu.core_type = #tpu.core_type<tc>, window_params = [{transform_indices = @transform_0, window_bounds = array<i64: 32, 48>}, {pipeline_mode = #tpu.pipeline_mode<synchronous>, transform_indices = @transform_1, window_bounds = array<i64: 48, 128>}, {transform_indices = @transform_2, window_bounds = array<i64: 2, 128>}]} {
    %c0 = arith.constant 0 : index
    %c0_0 = arith.constant 0 : index
    %0 = vector.load %arg1[%c0, %c0_0] : memref<32x48xbf16, #tpu.memory_space<vmem>>, vector<32x48xbf16>
    %c0_1 = arith.constant 0 : index
    %c0_2 = arith.constant 0 : index
    %1 = vector.load %arg2[%c0_1, %c0_2] : memref<48x128xbf16, #tpu.memory_space<vmem>>, vector<48x128xbf16>
    %cst = arith.constant dense<0.000000e+00> : vector<32x128xf32>
    %2 = tpu.matmul %0, %1, %cst {dimension_numbers = #tpu.dot_dimension_numbers<[1], [0], [0], [1], [0, 0, 1, 1], [], []>} : vector<32x48xbf16>, vector<48x128xbf16>, vector<32x128xf32> -> vector<32x128xf32>
    %cst_3 = arith.constant dense<0.000000e+00> : vector<128xf32>
    %3 = vector.multi_reduction <add>, %2, %cst_3 [0] : vector<32x128xf32> to vector<128xf32>
    %4 = vector.shape_cast %3 : vector<128xf32> to vector<1x128xf32>
    %5 = arith.mulf %2, %2 : vector<32x128xf32>
    %cst_4 = arith.constant dense<0.000000e+00> : vector<128xf32>
    %6 = vector.multi_reduction <add>, %5, %cst_4 [0] : vector<32x128xf32> to vector<128xf32>
    %7 = vector.shape_cast %6 : vector<128xf32> to vector<1x128xf32>
    %8 = tpu.iota {dimensions = array<i32: 0>} : vector<2x128xi32>
    %c0_i32 = arith.constant 0 : i32
    %9 = vector.broadcast %c0_i32 : i32 to vector<2x128xi32>
    %10 = arith.cmpi eq, %8, %9 : vector<2x128xi32>
    %11 = vector.shape_cast %4 : vector<1x128xf32> to vector<1x128xf32>
    %12 = vector.broadcast %11 : vector<1x128xf32> to vector<2x128xf32>
    %13 = vector.shape_cast %7 : vector<1x128xf32> to vector<1x128xf32>
    %14 = vector.broadcast %13 : vector<1x128xf32> to vector<2x128xf32>
    %15 = arith.select %10, %12, %14 : vector<2x128xi1>, vector<2x128xf32>
    %c0_5 = arith.constant 0 : index
    %c0_6 = arith.constant 0 : index
    %16 = vector.load %arg3[%c0_5, %c0_6] : memref<2x128xf32, #tpu.memory_space<vmem>>, vector<2x128xf32>
    tpu.vector_store %arg3[%c0_5, %c0_6], %15 {strides = array<i32>} : memref<2x128xf32, #tpu.memory_space<vmem>>, vector<2x128xf32>,
    return
  }
  func.func @transform_0(%arg0: i32) -> (i32, i32) {
    %c0_i32 = arith.constant 0 : i32
    %c0_i32_0 = arith.constant 0 : i32
    return %arg0, %c0_i32 : i32, i32
  }
  func.func @transform_1(%arg0: i32) -> (i32, i32) {
    %c0_i32 = arith.constant 0 : i32
    %c0_i32_0 = arith.constant 0 : i32
    %c0_i32_1 = arith.constant 0 : i32
    return %c0_i32, %c0_i32_0 : i32, i32
  }
  func.func @transform_2(%arg0: i32) -> (i32, i32) {
    %c0_i32 = arith.constant 0 : i32
    %c0_i32_0 = arith.constant 0 : i32
    return %c0_i32, %arg0 : i32, i32
  }
}

</mosaic_0001>

<llo_original>
// kernel: tpu_custom_call.1
$region0: #{tpu_custom_call.1}
  #allocation0 [shape = 'u32[]', space=smem, size = 0x4, offset = 0x4, fixed_abs, tag = 'smem constant byte address 0x4 - core index']
  #allocation1 [shape = 'u32[72,128]{1,0:T(1,128)}', space=vmem, size = 0x9000, scoped, tag = 'internal scratch']
  %s0 = inlined_call_operand.hbm [shape: bf16[32,48], index: 0, kind: input, shape index: {}]
  %s1 = inlined_call_operand.hbm [shape: bf16[48,128], index: 1, kind: input, shape index: {}]
  %s2 = inlined_call_operand.hbm [shape: f32[2,128], index: 2, kind: output, shape index: {}]
  %s3 = sld [smem:[#allocation0]]
  $region26: #{tpu_custom_call.1} parent=0
    _
  %s5 = ssub.s32 1, %s3
  %s6 = scalar_select 0, %s5, %s3
  $region1: #{tpu_custom_call.1} parent=0
    #allocation2 [shape = 'u8[8192]{0}', space=vmem, size = 0x2000, scoped, tag = 'input window, operand 0, single buffered']
    #allocation3 [shape = 's32[1]{0}', space=sflag, size = 0x4, scoped, tag = 'scoped memory for tpu_custom_call.1']
    #allocation4 [shape = 's32[1]{0}', space=sflag, size = 0x4, scoped, tag = 'scoped memory for tpu_custom_call.1']
    #allocation5 [shape = 'u8[12288]{0}', space=vmem, size = 0x3000, scoped, tag = 'input window, operand 1, single buffered']
    #allocation6 [shape = 's32[1]{0}', space=sflag, size = 0x4, scoped, tag = 'scoped memory for tpu_custom_call.1']
    #allocation7 [shape = 'u8[1024]{0}', space=vmem, size = 0x400, scoped, tag = 'output window, operand 0, single buffered']
    %7 = vsyncpa [#allocation3], 0
    %8 = vsyncpa [#allocation6], 0
    %9 = vsyncpa [#allocation4], 0
    // Predicated region
    $region2: #{tpu_custom_call.1} parent=1 // pred_check
      _
    $region3: #{tpu_custom_call.1} parent=1 // pred_check_branch
      %11 = sbr.rel (0) target = $region5
    $region4: #{tpu_custom_call.1} parent=1 // pred_region
      %13 = vsyncadd [#allocation3], 0
      %s14 = sshll.u32 %s0, 4
      %s15 = int_to_ptr.hbm [resolvable:$true] %s14
      %s16 = sshll.u32 [#allocation2], 4
      %s17 = int_to_ptr.vmem [resolvable:$true] %s16
      %22 = dma.hbm_to_vmem [thread:$0]  %s15, 256, %s17, [#allocation3], 64, 64, 4
    $region5: #{tpu_custom_call.1} parent=1 // pred_fallthru
      _
    // Predicated region
    $region6: #{tpu_custom_call.1} parent=1 // pred_check
      _
    $region7: #{tpu_custom_call.1} parent=1 // pred_check_branch
      %24 = sbr.rel (0) target = $region9
    $region8: #{tpu_custom_call.1} parent=1 // pred_region
      %26 = vsyncadd [#allocation6], 0
      %s27 = sshll.u32 %s1, 4
      %s28 = int_to_ptr.hbm [resolvable:$true] %s27
      %s29 = sshll.u32 [#allocation5], 4
      %s30 = int_to_ptr.vmem [resolvable:$true] %s29
      %35 = dma.hbm_to_vmem [thread:$0]  %s28, 384, %s30, [#allocation6], 64, 64, 4
    $region9: #{tpu_custom_call.1} parent=1 // pred_fallthru
      _
    // Predicated region
    $region10: #{tpu_custom_call.1} parent=1 // pred_check
      _
    $region11: #{tpu_custom_call.1} parent=1 // pred_check_branch
      %37 = sbr.rel (0) target = $region13
    $region12: #{tpu_custom_call.1} parent=1 // pred_region
      %39 = dma.done [#allocation3], 256
    $region13: #{tpu_custom_call.1} parent=1 // pred_fallthru
      _
    // Predicated region
    $region14: #{tpu_custom_call.1} parent=1 // pred_check
      _
    $region15: #{tpu_custom_call.1} parent=1 // pred_check_branch
      %41 = sbr.rel (0) target = $region17
    $region16: #{tpu_custom_call.1} parent=1 // pred_region
      %43 = dma.done [#allocation6], 384
    $region17: #{tpu_custom_call.1} parent=1 // pred_fallthru
      _
    %v45 = vld [vmem:[#allocation2] sm:$0xf]
    %v46 = vld [vmem:[#allocation2 + $0x4] sm:$0xf]
    %v47 = vld [vmem:[#allocation2 + $0x8] sm:$0xf]
    %v48 = vld [vmem:[#allocation2 + $0xc] sm:$0xf]
    %v49 = vld [vmem:[#allocation5] sm:$0xf]
    %v50 = vld [vmem:[#allocation5 + $0x4] sm:$0xf]
    %v51 = vld [vmem:[#allocation5 + $0x8] sm:$0xf]
    %v52 = vld [vmem:[#allocation5 + $0xc] sm:$0xf]
    %v53 = vld [vmem:[#allocation5 + $0x10] sm:$0xf]
    %v54 = vld [vmem:[#allocation5 + $0x14] sm:$0xf]
    %v59 = vunpack.c.l.b16 %v45
    %v60 = vunpack.c.l.b16 %v46
    %v61 = vunpack.c.l.b16 %v47
    %v62 = vunpack.c.l.b16 %v48
    %v63 = vpack.c.b16 %v60, %v59
    %v64 = vpack.c.b16 %v62, %v61
    %v71 = vunpack.c.l.b16 %v49
    %v72 = vunpack.c.l.b16 %v50
    %v73 = vunpack.c.l.b16 %v51
    %v74 = vunpack.c.l.b16 %v52
    %v75 = vunpack.c.l.b16 %v53
    %v76 = vunpack.c.l.b16 %v54
    %v77 = vpack.c.b16 %v72, %v71
    %v78 = vpack.c.b16 %v74, %v73
    %v79 = vpack.c.b16 %v76, %v75
    %vm83 = vcmask 392192
    %v85 = vsel %vm83, %v63, 0
    %v88 = vsel %vm83, %v64, 0
    %90 = vmatpush.bf16.msra.mxu0 0
    %91 = vmatpush.bf16.msra.mxu0 0
    %92 = vmatpush.bf16.msra.mxu0 0
    %93 = vmatpush.bf16.msra.mxu0 0
    %94 = vmatpush.bf16.msra.mxu0 0
    %95 = vmatpush.bf16.msra.mxu0 %v79
    %96 = vmatpush.bf16.msra.mxu0 %v78
    %97 = vmatpush.bf16.msra.mxu0 %v77
    %98 = vmatmul.bf16.gmra.mxu0 %v85
    %v99 = vpop.f32.mrf.mxu0
    %v100 = vadd.f32 0.0, %v99
    %v101 = vpop.f32.mrf.mxu0
    %v102 = vadd.f32 0.0, %v101
    %103 = vmatmul.bf16.gmra.mxu0 %v88
    %v104 = vpop.f32.mrf.mxu0
    %v105 = vadd.f32 0.0, %v104
    %v106 = vpop.f32.mrf.mxu0
    %v107 = vadd.f32 0.0, %v106
    %108 = vdwg.mxu0
    %v109 = vadd.f32 %v100, %v102
    %v110 = vadd.f32 %v109, %v105
    %v111 = vadd.f32 %v110, %v107
    %v112 = vrot.slane %v111, 4
    %v113 = vadd.f32 %v111, %v112
    %v114 = vrot.slane %v113, 2
    %v115 = vadd.f32 %v113, %v114
    %v116 = vrot.slane %v115, 1
    %v117 = vadd.f32 %v115, %v116
    %v118 = vmul.f32 %v100, %v100
    %v119 = vmul.f32 %v102, %v102
    %v120 = vmul.f32 %v105, %v105
    %v121 = vmul.f32 %v107, %v107
    %v122 = vadd.f32 %v118, %v119
    %v123 = vadd.f32 %v122, %v120
    %v124 = vadd.f32 %v123, %v121
    %v125 = vrot.slane %v124, 4
    %v126 = vadd.f32 %v124, %v125
    %v127 = vrot.slane %v126, 2
    %v128 = vadd.f32 %v126, %v127
    %v129 = vrot.slane %v128, 1
    %v130 = vadd.f32 %v128, %v129
    %v131 = vlaneseq
    %v132 = vshrl.u32 %v131, 7
    %vm133 = vcmp.eq.s32.totalorder %v132, 0
    %v134 = vsel %vm133, %v117, %v130
    %135 = vst [vmem:[#allocation7] sm:$0x3] %v134
    // Predicated region
    $region18: #{tpu_custom_call.1} parent=1 // pred_check
      _
    $region19: #{tpu_custom_call.1} parent=1 // pred_check_branch
      %137 = sbr.rel (0) target = $region21
    $region20: #{tpu_custom_call.1} parent=1 // pred_region
      %139 = vsyncadd [#allocation4], 0
      %s141 = sshll.u32 [#allocation7], 4
      %s142 = int_to_ptr.vmem [resolvable:$true] %s141
      %s143 = sshll.u32 %s2, 4
      %s144 = int_to_ptr.hbm [resolvable:$true] %s143
      %146 = dma.vmem_to_hbm [thread:$0]  %s142, 32, %s144, [#allocation4]
    $region21: #{tpu_custom_call.1} parent=1 // pred_fallthru
      _
    // Predicated region
    $region22: #{tpu_custom_call.1} parent=1 // pred_check
      _
    $region23: #{tpu_custom_call.1} parent=1 // pred_check_branch
      %148 = sbr.rel (0) target = $region25
    $region24: #{tpu_custom_call.1} parent=1 // pred_region
      %150 = dma.done [#allocation4], 32
    $region25: #{tpu_custom_call.1} parent=1 // pred_fallthru
      _
    %151 = vsyncpa [#allocation3], 1
    %152 = vsyncpa [#allocation6], 1
    %153 = vsyncpa [#allocation4], 1

</llo_original>
